<compile_context>
chip_gen: v7x
topology: tpu7x:2x2x1
jax: 0.10.0
libtpu: 0.0.40
codegen_flags: <defaults>
</compile_context>

<pallas_src>
import functools
import math

import jax
import jax.numpy as jnp
from jax.experimental import pallas as pl
from jax.experimental.pallas import tpu as pltpu

NEG_SLOPE = 0.2
LRELU_GAIN = math.sqrt(2.0)  # fused_leaky_relu output scale = 2**0.5


# ---------------------------------------------------------------------------
# Kernel
# ---------------------------------------------------------------------------
def projector_kernel(x_ref, wt_ref, b_ref, o_ref, *, precision=None):
    """Whole n_mlp-layer MLP for one batch tile.

    x_ref : (TB, D)        activation tile (input dtype)
    wt_ref: (n_mlp, D, D)  pre-transposed weights, eq-lr scale folded in
    b_ref : (n_mlp, D)     biases (f32)
    o_ref : (TB, D)        output tile
    """
    n_mlp = wt_ref.shape[0]
    cdtype = wt_ref.dtype  # compute/carry dtype (bf16 fast path or f32)

    h = x_ref[...].astype(cdtype)  # running activation stays as an SSA value

    for l in range(n_mlp):  # static unroll; n_mlp is small (=4)
        # MXU matmul, f32 accumulation.  (precision=HIGHEST available for
        # bit-faithful f32 parity at ~3x MXU cost; default is the fast path.)
        y = jnp.dot(h, wt_ref[l], preferred_element_type=jnp.float32,
                    precision=precision)
        y = y + b_ref[l][None, :].astype(jnp.float32)  # bias * lr_mul (=1), f32
        if l < n_mlp - 1:
            # fused_leaky_relu: leaky_relu(., 0.2) * sqrt(2) -> one select + one mul
            y = y * jnp.where(y >= 0.0, LRELU_GAIN, NEG_SLOPE * LRELU_GAIN)
            h = y.astype(cdtype)  # carry in compute dtype (halves spill traffic)
        else:
            h = y  # last layer: no activation

    o_ref[...] = h.astype(o_ref.dtype)


# ---------------------------------------------------------------------------
# One-time parameter prep (hoist out of the hot call path)
# ---------------------------------------------------------------------------
def prepare_projector_params(weights, biases, *, param_dtype=jnp.bfloat16):
    """weights: (n_mlp, D_out, D_in) PyTorch EqualLinear layout; biases: (n_mlp, D_out).

    Returns wt = transpose(weights) * (1/sqrt(D_in)) so the kernel does `h @ wt[l]`,
    cast to `param_dtype` (bf16 default: MXU fast path), plus f32 biases.
    Call ONCE per model and reuse; do not put this in the per-step path.
    """
    n_mlp, d_out, d_in = weights.shape
    eq_scale = 1.0 / math.sqrt(d_in)  # EqualLinear scale, lr_mul = 1 in Projector
    wt = jnp.transpose(weights, (0, 2, 1)).astype(jnp.float32) * eq_scale
    if param_dtype is not None:
        wt = wt.astype(param_dtype)
    b = biases.astype(jnp.float32)  # keep f32 for the epilogue (v5e has no bf16 VPU)
    return wt, b


# ---------------------------------------------------------------------------
# Tiling / VMEM budgeting
# ---------------------------------------------------------------------------
def _vmem_capacity_bytes():
    try:
        return int(pltpu.get_tpu_info().vmem_capacity_bytes)
    except Exception:
        return 64 << 20  # conservative: v7x per-TensorCore VMEM


def _vmem_needed(tb, D, n_mlp, w_isz, x_isz, o_isz, single_buffer):
    nbuf = 1 if single_buffer else 2
    wbuf = nbuf * n_mlp * D * D * w_isz        # resident weight slab
    bbuf = nbuf * n_mlp * D * 4                # biases (f32)
    xbuf = 2 * tb * D * x_isz                  # double-buffered input tiles
    obuf = 2 * tb * D * o_isz                  # double-buffered output tiles
    hbuf = 2 * tb * D * max(w_isz, 4)          # spilled running activation + f32 temps
    return wbuf + bbuf + xbuf + obuf + hbuf + (4 << 20)  # + compiler scratch margin


def _pick_tb(B, D, n_mlp, w_isz, x_isz, o_isz, budget, single_buffer):
    """Largest batch tile <= 1024 that divides B (already 8-aligned) and fits VMEM."""
    tb = 8
    for cand in (1024, 512, 256, 128, 64, 32, 16, 8):
        if B % cand == 0 and _vmem_needed(
                cand, D, n_mlp, w_isz, x_isz, o_isz, single_buffer) <= budget:
            tb = cand
            break
    # Prefer >=2 grid steps when B allows it so v7x's two TensorCores both get work.
    if B // tb == 1 and tb >= 16 and (tb // 2) % 8 == 0:
        tb //= 2
    return tb


# ---------------------------------------------------------------------------
# pallas_call builder (cached per configuration)
# ---------------------------------------------------------------------------
@functools.lru_cache(maxsize=None)
def _build_projector_call(B, D, n_mlp, tb, out_dtype_name, vmem_limit,
                          single_buffer, precision):
    out_dtype = jnp.dtype(out_dtype_name)
    # Constant-index blocks: single-buffer them (no point double-buffering a
    # block that never changes) when this JAX build supports per-operand
    # pipeline_mode.
    const_kwargs = dict(pipeline_mode=pl.Buffered(1)) if single_buffer else {}
    kernel = functools.partial(projector_kernel, precision=precision)
    return pl.pallas_call(
        kernel,
        out_shape=jax.ShapeDtypeStruct((B, D), out_dtype),
        grid_spec=pltpu.PrefetchScalarGridSpec(
            num_scalar_prefetch=0,
            grid=(B // tb,),
            in_specs=[
                pl.BlockSpec((tb, D), lambda i: (i, 0)),                         # x tile
                pl.BlockSpec((n_mlp, D, D), lambda i: (0, 0, 0), **const_kwargs),  # weights
                pl.BlockSpec((n_mlp, D), lambda i: (0, 0), **const_kwargs),        # biases
            ],
            out_specs=pl.BlockSpec((tb, D), lambda i: (i, 0)),
        ),
        compiler_params=pltpu.CompilerParams(
            dimension_semantics=("parallel",),
            vmem_limit_bytes=vmem_limit,
        ),
    )


_SINGLE_BUFFER_OK = None  # probed lazily; graceful fallback to default buffering


def projector_fwd(x, wt, b, *, precision=None):
    """x: (B, D); wt/b: outputs of prepare_projector_params (hoisted, reused)."""
    global _SINGLE_BUFFER_OK
    B, D = x.shape
    n_mlp = wt.shape[0]

    # Pad batch to a multiple of 8 so sublane tiles stay unmasked / 8-aligned.
    pad = (-B) % 8
    x_in = jnp.pad(x, ((0, pad), (0, 0))) if pad else x
    Bp = B + pad

    w_isz = jnp.dtype(wt.dtype).itemsize
    x_isz = jnp.dtype(x.dtype).itemsize
    o_isz = x_isz
    budget = int(0.9 * _vmem_capacity_bytes())  # clamp to physical per-core VMEM

    def make(single_buffer):
        tb = _pick_tb(Bp, D, n_mlp, w_isz, x_isz, o_isz, budget, single_buffer)
        needed = _vmem_needed(tb, D, n_mlp, w_isz, x_isz, o_isz, single_buffer)
        vmem_limit = min(max(needed, 32 << 20), budget)
        return _build_projector_call(Bp, D, n_mlp, tb, jnp.dtype(x.dtype).name,
                                     int(vmem_limit), single_buffer, precision)

    if _SINGLE_BUFFER_OK is None:
        try:
            out = jax.block_until_ready(make(True)(x_in, wt, b))
            _SINGLE_BUFFER_OK = True
        except Exception:
            _SINGLE_BUFFER_OK = False
            out = make(False)(x_in, wt, b)
    else:
        out = make(_SINGLE_BUFFER_OK)(x_in, wt, b)

    return out[:B] if pad else out


def projector(x, weights, biases, *, param_dtype=jnp.bfloat16, precision=None):
    """Convenience wrapper (prep + fwd).  Production code should call
    prepare_projector_params once per model and reuse projector_fwd."""
    wt, b = prepare_projector_params(weights, biases, param_dtype=param_dtype)
    return projector_fwd(x, wt, b, precision=precision)


# ---------------------------------------------------------------------------
# Pure-JAX reference (mirrors the PyTorch forward)
# ---------------------------------------------------------------------------
def projector_ref(x, weights, biases):
    h = x.astype(jnp.float32)
    n_mlp = weights.shape[0]
    eq_scale = 1.0 / math.sqrt(weights.shape[2])
    for l in range(n_mlp):
        y = h @ (weights[l].astype(jnp.float32) * eq_scale).T + biases[l]
        if l < n_mlp - 1:
            y = jnp.where(y >= 0.0, y, NEG_SLOPE * y) * LRELU_GAIN
        h = y
    return h.astype(x.dtype)


if __name__ == "__main__":
    # Small shapes consistent with the module: style_dim -> 128 (lane-aligned),
    # n_mlp = 4 (3 fused_lrelu layers + 1 plain linear), batch = 8.
    B, D, N_MLP = 8, 128, 4

    key = jax.random.PRNGKey(0)
    kx, kw, kb, kx2 = jax.random.split(key, 4)

    x = jax.random.normal(kx, (B, D), dtype=jnp.float32)
    # EqualLinear.__init__: weight = randn(out_dim, in_dim) / lr_mul (lr_mul=1).
    weights = jax.random.normal(kw, (N_MLP, D, D), dtype=jnp.float32)
    # Module inits bias to 0; use small random biases to exercise the bias path.
    biases = 0.1 * jax.random.normal(kb, (N_MLP, D), dtype=jnp.float32)

    ref = projector_ref(x, weights, biases)

    # --- f32-weight path (same semantics as the PyTorch module at default MXU precision) ---
    wt32, b32 = prepare_projector_params(weights, biases, param_dtype=jnp.float32)
    out32 = jax.block_until_ready(projector_fwd(x, wt32, b32))
    err32 = float(jnp.max(jnp.abs(out32 - ref)))
    assert jnp.allclose(out32, ref, atol=2e-3, rtol=2e-3), err32

    # --- bf16-weight production default (f32 accumulate + f32 epilogue) ---
    wt16, b16 = prepare_projector_params(weights, biases)  # param_dtype defaults to bf16
    out16 = jax.block_until_ready(projector_fwd(x, wt16, b16))
    rel16 = float(jnp.max(jnp.abs(out16 - ref)) / (jnp.max(jnp.abs(ref)) + 1e-6))
    assert rel16 < 5e-2, rel16

    # --- batch not a multiple of 8: exercises padding + a multi-step "parallel" grid ---
    B2 = 12
    x2 = jax.random.normal(kx2, (B2, D), dtype=jnp.float32)
    ref2 = projector_ref(x2, weights, biases)
    out2 = jax.block_until_ready(projector_fwd(x2, wt16, b16))
    rel2 = float(jnp.max(jnp.abs(out2 - ref2)) / (jnp.max(jnp.abs(ref2)) + 1e-6))
    assert out2.shape == (B2, D) and rel2 < 5e-2, (out2.shape, rel2)

    print("KERNEL_OK")
</pallas_src>

<mosaic_0001>
module attributes {stable_mosaic.version = 11 : i64} {
  func.func @projector_kernel(%arg0: i32, %arg1: memref<8x128xf32, #tpu.memory_space<vmem>>, %arg2: memref<4x128x128xf32, #tpu.memory_space<vmem>>, %arg3: memref<4x128xf32, #tpu.memory_space<vmem>>, %arg4: memref<8x128xf32, #tpu.memory_space<vmem>>) attributes {dimension_semantics = [#tpu.dimension_semantics<parallel>], iteration_bounds = array<i64: 1>, scalar_prefetch = 0 : i64, scratch_operands = 0 : i64, tpu.core_type = #tpu.core_type<tc>, window_params = [{transform_indices = @transform_0, window_bounds = array<i64: 8, 128>}, {pipeline_mode = #tpu.pipeline_mode<synchronous>, transform_indices = @transform_1, window_bounds = array<i64: 4, 128, 128>}, {pipeline_mode = #tpu.pipeline_mode<synchronous>, transform_indices = @transform_2, window_bounds = array<i64: 4, 128>}, {transform_indices = @transform_3, window_bounds = array<i64: 8, 128>}]} {
    %c0 = arith.constant 0 : index
    %c0_0 = arith.constant 0 : index
    %0 = vector.load %arg1[%c0, %c0_0] : memref<8x128xf32, #tpu.memory_space<vmem>>, vector<8x128xf32>
    %c0_1 = arith.constant 0 : index
    %c0_2 = arith.constant 0 : index
    %c0_3 = arith.constant 0 : index
    %1 = vector.load %arg2[%c0_1, %c0_2, %c0_3] : memref<4x128x128xf32, #tpu.memory_space<vmem>>, vector<1x128x128xf32>
    %2 = vector.shape_cast %1 : vector<1x128x128xf32> to vector<128x128xf32>
    %cst = arith.constant dense<0.000000e+00> : vector<8x128xf32>
    %3 = tpu.matmul %0, %2, %cst {dimension_numbers = #tpu.dot_dimension_numbers<[1], [0], [0], [1], [0, 0, 1, 1], [], []>} : vector<8x128xf32>, vector<128x128xf32>, vector<8x128xf32> -> vector<8x128xf32>
    %c0_4 = arith.constant 0 : index
    %c0_5 = arith.constant 0 : index
    %4 = vector.load %arg3[%c0_4, %c0_5] : memref<4x128xf32, #tpu.memory_space<vmem>>, vector<1x128xf32>
    %5 = vector.shape_cast %4 : vector<1x128xf32> to vector<128xf32>
    %6 = vector.shape_cast %5 : vector<128xf32> to vector<1x128xf32>
    %7 = vector.broadcast %6 : vector<1x128xf32> to vector<8x128xf32>
    %8 = arith.addf %3, %7 : vector<8x128xf32>
    %cst_6 = arith.constant 0.000000e+00 : f32
    %9 = vector.broadcast %cst_6 : f32 to vector<8x128xf32>
    %10 = arith.cmpf oge, %8, %9 : vector<8x128xf32>
    %cst_7 = arith.constant 1.41421354 : f32
    %cst_8 = arith.constant 0.282842726 : f32
    %11 = vector.broadcast %cst_7 : f32 to vector<8x128xf32>
    %12 = vector.broadcast %cst_8 : f32 to vector<8x128xf32>
    %13 = arith.select %10, %11, %12 : vector<8x128xi1>, vector<8x128xf32>
    %14 = arith.mulf %8, %13 : vector<8x128xf32>
    %c1 = arith.constant 1 : index
    %c0_9 = arith.constant 0 : index
    %c0_10 = arith.constant 0 : index
    %15 = vector.load %arg2[%c1, %c0_9, %c0_10] : memref<4x128x128xf32, #tpu.memory_space<vmem>>, vector<1x128x128xf32>
    %16 = vector.shape_cast %15 : vector<1x128x128xf32> to vector<128x128xf32>
    %cst_11 = arith.constant dense<0.000000e+00> : vector<8x128xf32>
    %17 = tpu.matmul %14, %16, %cst_11 {dimension_numbers = #tpu.dot_dimension_numbers<[1], [0], [0], [1], [0, 0, 1, 1], [], []>} : vector<8x128xf32>, vector<128x128xf32>, vector<8x128xf32> -> vector<8x128xf32>
    %c1_12 = arith.constant 1 : index
    %c0_13 = arith.constant 0 : index
    %18 = vector.load %arg3[%c1_12, %c0_13] : memref<4x128xf32, #tpu.memory_space<vmem>>, vector<1x128xf32>
    %19 = vector.shape_cast %18 : vector<1x128xf32> to vector<128xf32>
    %20 = vector.shape_cast %19 : vector<128xf32> to vector<1x128xf32>
    %21 = vector.broadcast %20 : vector<1x128xf32> to vector<8x128xf32>
    %22 = arith.addf %17, %21 : vector<8x128xf32>
    %cst_14 = arith.constant 0.000000e+00 : f32
    %23 = vector.broadcast %cst_14 : f32 to vector<8x128xf32>
    %24 = arith.cmpf oge, %22, %23 : vector<8x128xf32>
    %cst_15 = arith.constant 1.41421354 : f32
    %cst_16 = arith.constant 0.282842726 : f32
    %25 = vector.broadcast %cst_15 : f32 to vector<8x128xf32>
    %26 = vector.broadcast %cst_16 : f32 to vector<8x128xf32>
    %27 = arith.select %24, %25, %26 : vector<8x128xi1>, vector<8x128xf32>
    %28 = arith.mulf %22, %27 : vector<8x128xf32>
    %c2 = arith.constant 2 : index
    %c0_17 = arith.constant 0 : index
    %c0_18 = arith.constant 0 : index
    %29 = vector.load %arg2[%c2, %c0_17, %c0_18] : memref<4x128x128xf32, #tpu.memory_space<vmem>>, vector<1x128x128xf32>
    %30 = vector.shape_cast %29 : vector<1x128x128xf32> to vector<128x128xf32>
    %cst_19 = arith.constant dense<0.000000e+00> : vector<8x128xf32>
    %31 = tpu.matmul %28, %30, %cst_19 {dimension_numbers = #tpu.dot_dimension_numbers<[1], [0], [0], [1], [0, 0, 1, 1], [], []>} : vector<8x128xf32>, vector<128x128xf32>, vector<8x128xf32> -> vector<8x128xf32>
    %c2_20 = arith.constant 2 : index
    %c0_21 = arith.constant 0 : index
    %32 = vector.load %arg3[%c2_20, %c0_21] : memref<4x128xf32, #tpu.memory_space<vmem>>, vector<1x128xf32>
    %33 = vector.shape_cast %32 : vector<1x128xf32> to vector<128xf32>
    %34 = vector.shape_cast %33 : vector<128xf32> to vector<1x128xf32>
    %35 = vector.broadcast %34 : vector<1x128xf32> to vector<8x128xf32>
    %36 = arith.addf %31, %35 : vector<8x128xf32>
    %cst_22 = arith.constant 0.000000e+00 : f32
    %37 = vector.broadcast %cst_22 : f32 to vector<8x128xf32>
    %38 = arith.cmpf oge, %36, %37 : vector<8x128xf32>
    %cst_23 = arith.constant 1.41421354 : f32
    %cst_24 = arith.constant 0.282842726 : f32
    %39 = vector.broadcast %cst_23 : f32 to vector<8x128xf32>
    %40 = vector.broadcast %cst_24 : f32 to vector<8x128xf32>
    %41 = arith.select %38, %39, %40 : vector<8x128xi1>, vector<8x128xf32>
    %42 = arith.mulf %36, %41 : vector<8x128xf32>
    %c3 = arith.constant 3 : index
    %c0_25 = arith.constant 0 : index
    %c0_26 = arith.constant 0 : index
    %43 = vector.load %arg2[%c3, %c0_25, %c0_26] : memref<4x128x128xf32, #tpu.memory_space<vmem>>, vector<1x128x128xf32>
    %44 = vector.shape_cast %43 : vector<1x128x128xf32> to vector<128x128xf32>
    %cst_27 = arith.constant dense<0.000000e+00> : vector<8x128xf32>
    %45 = tpu.matmul %42, %44, %cst_27 {dimension_numbers = #tpu.dot_dimension_numbers<[1], [0], [0], [1], [0, 0, 1, 1], [], []>} : vector<8x128xf32>, vector<128x128xf32>, vector<8x128xf32> -> vector<8x128xf32>
    %c3_28 = arith.constant 3 : index
    %c0_29 = arith.constant 0 : index
    %46 = vector.load %arg3[%c3_28, %c0_29] : memref<4x128xf32, #tpu.memory_space<vmem>>, vector<1x128xf32>
    %47 = vector.shape_cast %46 : vector<1x128xf32> to vector<128xf32>
    %48 = vector.shape_cast %47 : vector<128xf32> to vector<1x128xf32>
    %49 = vector.broadcast %48 : vector<1x128xf32> to vector<8x128xf32>
    %50 = arith.addf %45, %49 : vector<8x128xf32>
    %c0_30 = arith.constant 0 : index
    %c0_31 = arith.constant 0 : index
    %51 = vector.load %arg4[%c0_30, %c0_31] : memref<8x128xf32, #tpu.memory_space<vmem>>, vector<8x128xf32>
    tpu.vector_store %arg4[%c0_30, %c0_31], %50 {strides = array<i32>} : memref<8x128xf32, #tpu.memory_space<vmem>>, vector<8x128xf32>,
    return
  }
  func.func @transform_0(%arg0: i32) -> (i32, i32) {
    %c0_i32 = arith.constant 0 : i32
    %c0_i32_0 = arith.constant 0 : i32
    return %arg0, %c0_i32 : i32, i32
  }
  func.func @transform_1(%arg0: i32) -> (i32, i32, i32) {
    %c0_i32 = arith.constant 0 : i32
    %c0_i32_0 = arith.constant 0 : i32
    %c0_i32_1 = arith.constant 0 : i32
    %c0_i32_2 = arith.constant 0 : i32
    return %c0_i32, %c0_i32_0, %c0_i32_1 : i32, i32, i32
  }
  func.func @transform_2(%arg0: i32) -> (i32, i32) {
    %c0_i32 = arith.constant 0 : i32
    %c0_i32_0 = arith.constant 0 : i32
    %c0_i32_1 = arith.constant 0 : i32
    return %c0_i32, %c0_i32_0 : i32, i32
  }
  func.func @transform_3(%arg0: i32) -> (i32, i32) {
    %c0_i32 = arith.constant 0 : i32
    %c0_i32_0 = arith.constant 0 : i32
    return %arg0, %c0_i32 : i32, i32
  }
}

module attributes {stable_mosaic.version = 11 : i64} {
  func.func @projector_kernel(%arg0: i32, %arg1: memref<8x128xf32, #tpu.memory_space<vmem>>, %arg2: memref<4x128x128xf32, #tpu.memory_space<vmem>>, %arg3: memref<4x128xf32, #tpu.memory_space<vmem>>, %arg4: memref<8x128xf32, #tpu.memory_space<vmem>>) attributes {dimension_semantics = [#tpu.dimension_semantics<parallel>], iteration_bounds = array<i64: 1>, scalar_prefetch = 0 : i64, scratch_operands = 0 : i64, tpu.core_type = #tpu.core_type<tc>, window_params = [{transform_indices = @transform_0, window_bounds = array<i64: 8, 128>}, {pipeline_mode = #tpu.pipeline_mode<synchronous>, transform_indices = @transform_1, window_bounds = array<i64: 4, 128, 128>}, {pipeline_mode = #tpu.pipeline_mode<synchronous>, transform_indices = @transform_2, window_bounds = array<i64: 4, 128>}, {transform_indices = @transform_3, window_bounds = array<i64: 8, 128>}]} {
    %c0 = arith.constant 0 : index
    %c0_0 = arith.constant 0 : index
    %0 = vector.load %arg1[%c0, %c0_0] : memref<8x128xf32, #tpu.memory_space<vmem>>, vector<8x128xf32>
    %c0_1 = arith.constant 0 : index
    %c0_2 = arith.constant 0 : index
    %c0_3 = arith.constant 0 : index
    %1 = vector.load %arg2[%c0_1, %c0_2, %c0_3] : memref<4x128x128xf32, #tpu.memory_space<vmem>>, vector<1x128x128xf32>
    %2 = vector.shape_cast %1 : vector<1x128x128xf32> to vector<128x128xf32>
    %cst = arith.constant dense<0.000000e+00> : vector<8x128xf32>
    %3 = tpu.matmul %0, %2, %cst {dimension_numbers = #tpu.dot_dimension_numbers<[1], [0], [0], [1], [0, 0, 1, 1], [], []>} : vector<8x128xf32>, vector<128x128xf32>, vector<8x128xf32> -> vector<8x128xf32>
    %c0_4 = arith.constant 0 : index
    %c0_5 = arith.constant 0 : index
    %4 = vector.load %arg3[%c0_4, %c0_5] : memref<4x128xf32, #tpu.memory_space<vmem>>, vector<1x128xf32>
    %5 = vector.shape_cast %4 : vector<1x128xf32> to vector<128xf32>
    %6 = vector.shape_cast %5 : vector<128xf32> to vector<1x128xf32>
    %7 = vector.broadcast %6 : vector<1x128xf32> to vector<8x128xf32>
    %8 = arith.addf %3, %7 : vector<8x128xf32>
    %cst_6 = arith.constant 0.000000e+00 : f32
    %9 = vector.broadcast %cst_6 : f32 to vector<8x128xf32>
    %10 = arith.cmpf oge, %8, %9 : vector<8x128xf32>
    %cst_7 = arith.constant 1.41421354 : f32
    %cst_8 = arith.constant 0.282842726 : f32
    %11 = vector.broadcast %cst_7 : f32 to vector<8x128xf32>
    %12 = vector.broadcast %cst_8 : f32 to vector<8x128xf32>
    %13 = arith.select %10, %11, %12 : vector<8x128xi1>, vector<8x128xf32>
    %14 = arith.mulf %8, %13 : vector<8x128xf32>
    %c1 = arith.constant 1 : index
    %c0_9 = arith.constant 0 : index
    %c0_10 = arith.constant 0 : index
    %15 = vector.load %arg2[%c1, %c0_9, %c0_10] : memref<4x128x128xf32, #tpu.memory_space<vmem>>, vector<1x128x128xf32>
    %16 = vector.shape_cast %15 : vector<1x128x128xf32> to vector<128x128xf32>
    %cst_11 = arith.constant dense<0.000000e+00> : vector<8x128xf32>
    %17 = tpu.matmul %14, %16, %cst_11 {dimension_numbers = #tpu.dot_dimension_numbers<[1], [0], [0], [1], [0, 0, 1, 1], [], []>} : vector<8x128xf32>, vector<128x128xf32>, vector<8x128xf32> -> vector<8x128xf32>
    %c1_12 = arith.constant 1 : index
    %c0_13 = arith.constant 0 : index
    %18 = vector.load %arg3[%c1_12, %c0_13] : memref<4x128xf32, #tpu.memory_space<vmem>>, vector<1x128xf32>
    %19 = vector.shape_cast %18 : vector<1x128xf32> to vector<128xf32>
    %20 = vector.shape_cast %19 : vector<128xf32> to vector<1x128xf32>
    %21 = vector.broadcast %20 : vector<1x128xf32> to vector<8x128xf32>
    %22 = arith.addf %17, %21 : vector<8x128xf32>
    %cst_14 = arith.constant 0.000000e+00 : f32
    %23 = vector.broadcast %cst_14 : f32 to vector<8x128xf32>
    %24 = arith.cmpf oge, %22, %23 : vector<8x128xf32>
    %cst_15 = arith.constant 1.41421354 : f32
    %cst_16 = arith.constant 0.282842726 : f32
    %25 = vector.broadcast %cst_15 : f32 to vector<8x128xf32>
    %26 = vector.broadcast %cst_16 : f32 to vector<8x128xf32>
    %27 = arith.select %24, %25, %26 : vector<8x128xi1>, vector<8x128xf32>
    %28 = arith.mulf %22, %27 : vector<8x128xf32>
    %c2 = arith.constant 2 : index
    %c0_17 = arith.constant 0 : index
    %c0_18 = arith.constant 0 : index
    %29 = vector.load %arg2[%c2, %c0_17, %c0_18] : memref<4x128x128xf32, #tpu.memory_space<vmem>>, vector<1x128x128xf32>
    %30 = vector.shape_cast %29 : vector<1x128x128xf32> to vector<128x128xf32>
    %cst_19 = arith.constant dense<0.000000e+00> : vector<8x128xf32>
    %31 = tpu.matmul %28, %30, %cst_19 {dimension_numbers = #tpu.dot_dimension_numbers<[1], [0], [0], [1], [0, 0, 1, 1], [], []>} : vector<8x128xf32>, vector<128x128xf32>, vector<8x128xf32> -> vector<8x128xf32>
    %c2_20 = arith.constant 2 : index
    %c0_21 = arith.constant 0 : index
    %32 = vector.load %arg3[%c2_20, %c0_21] : memref<4x128xf32, #tpu.memory_space<vmem>>, vector<1x128xf32>
    %33 = vector.shape_cast %32 : vector<1x128xf32> to vector<128xf32>
    %34 = vector.shape_cast %33 : vector<128xf32> to vector<1x128xf32>
    %35 = vector.broadcast %34 : vector<1x128xf32> to vector<8x128xf32>
    %36 = arith.addf %31, %35 : vector<8x128xf32>
    %cst_22 = arith.constant 0.000000e+00 : f32
    %37 = vector.broadcast %cst_22 : f32 to vector<8x128xf32>
    %38 = arith.cmpf oge, %36, %37 : vector<8x128xf32>
    %cst_23 = arith.constant 1.41421354 : f32
    %cst_24 = arith.constant 0.282842726 : f32
    %39 = vector.broadcast %cst_23 : f32 to vector<8x128xf32>
    %40 = vector.broadcast %cst_24 : f32 to vector<8x128xf32>
    %41 = arith.select %38, %39, %40 : vector<8x128xi1>, vector<8x128xf32>
    %42 = arith.mulf %36, %41 : vector<8x128xf32>
    %c3 = arith.constant 3 : index
    %c0_25 = arith.constant 0 : index
    %c0_26 = arith.constant 0 : index
    %43 = vector.load %arg2[%c3, %c0_25, %c0_26] : memref<4x128x128xf32, #tpu.memory_space<vmem>>, vector<1x128x128xf32>
    %44 = vector.shape_cast %43 : vector<1x128x128xf32> to vector<128x128xf32>
    %cst_27 = arith.constant dense<0.000000e+00> : vector<8x128xf32>
    %45 = tpu.matmul %42, %44, %cst_27 {dimension_numbers = #tpu.dot_dimension_numbers<[1], [0], [0], [1], [0, 0, 1, 1], [], []>} : vector<8x128xf32>, vector<128x128xf32>, vector<8x128xf32> -> vector<8x128xf32>
    %c3_28 = arith.constant 3 : index
    %c0_29 = arith.constant 0 : index
    %46 = vector.load %arg3[%c3_28, %c0_29] : memref<4x128xf32, #tpu.memory_space<vmem>>, vector<1x128xf32>
    %47 = vector.shape_cast %46 : vector<1x128xf32> to vector<128xf32>
    %48 = vector.shape_cast %47 : vector<128xf32> to vector<1x128xf32>
    %49 = vector.broadcast %48 : vector<1x128xf32> to vector<8x128xf32>
    %50 = arith.addf %45, %49 : vector<8x128xf32>
    %c0_30 = arith.constant 0 : index
    %c0_31 = arith.constant 0 : index
    %51 = vector.load %arg4[%c0_30, %c0_31] : memref<8x128xf32, #tpu.memory_space<vmem>>, vector<8x128xf32>
    tpu.vector_store %arg4[%c0_30, %c0_31], %50 {strides = array<i32>} : memref<8x128xf32, #tpu.memory_space<vmem>>, vector<8x128xf32>,
    return
  }
  func.func @transform_0(%arg0: i32) -> (i32, i32) {
    %c0_i32 = arith.constant 0 : i32
    %c0_i32_0 = arith.constant 0 : i32
    return %arg0, %c0_i32 : i32, i32
  }
  func.func @transform_1(%arg0: i32) -> (i32, i32, i32) {
    %c0_i32 = arith.constant 0 : i32
    %c0_i32_0 = arith.constant 0 : i32
    %c0_i32_1 = arith.constant 0 : i32
    %c0_i32_2 = arith.constant 0 : i32
    return %c0_i32, %c0_i32_0, %c0_i32_1 : i32, i32, i32
  }
  func.func @transform_2(%arg0: i32) -> (i32, i32) {
    %c0_i32 = arith.constant 0 : i32
    %c0_i32_0 = arith.constant 0 : i32
    %c0_i32_1 = arith.constant 0 : i32
    return %c0_i32, %c0_i32_0 : i32, i32
  }
  func.func @transform_3(%arg0: i32) -> (i32, i32) {
    %c0_i32 = arith.constant 0 : i32
    %c0_i32_0 = arith.constant 0 : i32
    return %arg0, %c0_i32 : i32, i32
  }
}

</mosaic_0001>

<llo_original>
// kernel: tpu_custom_call.1
$region0: #{tpu_custom_call.1}
  #allocation0 [shape = 'u32[]', space=smem, size = 0x4, offset = 0x4, fixed_abs, tag = 'smem constant byte address 0x4 - core index']
  #allocation1 [shape = 'u32[144,128]{1,0:T(1,128)}', space=vmem, size = 0x12000, scoped, tag = 'internal scratch']
  %s0 = inlined_call_operand.hbm [shape: f32[8,128], index: 0, kind: input, shape index: {}]
  %s1 = inlined_call_operand.hbm [shape: f32[4,128,128], index: 1, kind: input, shape index: {}]
  %s2 = inlined_call_operand.vmem [shape: f32[4,128], index: 2, kind: input, shape index: {}]
  %s3 = inlined_call_operand.hbm [shape: f32[8,128], index: 3, kind: output, shape index: {}]
  %s4 = sld [smem:[#allocation0]]
  $region30: #{tpu_custom_call.1} parent=0
    _
  %s6 = ssub.s32 1, %s4
  %s7 = scalar_select 0, %s6, %s4
  $region1: #{tpu_custom_call.1} parent=0
    #allocation2 [shape = 'u8[4096]{0}', space=vmem, size = 0x1000, scoped, tag = 'input window, operand 0, single buffered']
    #allocation3 [shape = 's32[1]{0}', space=sflag, size = 0x4, scoped, tag = 'scoped memory for tpu_custom_call.1']
    #allocation4 [shape = 's32[1]{0}', space=sflag, size = 0x4, scoped, tag = 'scoped memory for tpu_custom_call.1']
    #allocation5 [shape = 'u8[262144]{0}', space=vmem, size = 0x40000, scoped, tag = 'input window, operand 1, single buffered']
    #allocation6 [shape = 's32[1]{0}', space=sflag, size = 0x4, scoped, tag = 'scoped memory for tpu_custom_call.1']
    #allocation7 [shape = 'u8[4096]{0}', space=vmem, size = 0x1000, scoped, tag = 'output window, operand 0, single buffered']
    %8 = vsyncpa [#allocation3], 0
    %9 = vsyncpa [#allocation6], 0
    %10 = vsyncpa [#allocation4], 0
    // Predicated region
    $region2: #{tpu_custom_call.1} parent=1 // pred_check
      _
    $region3: #{tpu_custom_call.1} parent=1 // pred_check_branch
      %12 = sbr.rel (0) target = $region5
    $region4: #{tpu_custom_call.1} parent=1 // pred_region
      %s14 = ssub.s32 128, 128
      %15 = vsyncadd [#allocation3], %s14
      %s17 = sshll.u32 [#allocation2], 4
      %s18 = int_to_ptr.vmem [resolvable:$true] %s17
      %20 = dma.hbm_to_vmem [thread:$0]  %s0, 128, %s18, [#allocation3]
    $region5: #{tpu_custom_call.1} parent=1 // pred_fallthru
      _
    // Predicated region
    $region6: #{tpu_custom_call.1} parent=1 // pred_check
      _
    $region7: #{tpu_custom_call.1} parent=1 // pred_check_branch
      %22 = sbr.rel (0) target = $region9
    $region8: #{tpu_custom_call.1} parent=1 // pred_region
      %s24 = ssub.s32 8192, 8192
      %25 = vsyncadd [#allocation6], %s24
      %s26 = sshll.u32 [#allocation5], 4
      %s27 = int_to_ptr.vmem [resolvable:$true] %s26
      %32 = dma.hbm_to_vmem [thread:$0]  %s1, 8192, %s27, [#allocation6], 128, 128, 8
    $region9: #{tpu_custom_call.1} parent=1 // pred_fallthru
      _
    // Predicated region
    $region10: #{tpu_custom_call.1} parent=1 // pred_check
      _
    $region11: #{tpu_custom_call.1} parent=1 // pred_check_branch
      %34 = sbr.rel (0) target = $region13
    $region12: #{tpu_custom_call.1} parent=1 // pred_region
      _
    $region13: #{tpu_custom_call.1} parent=1 // pred_fallthru
      _
    // Predicated region
    $region14: #{tpu_custom_call.1} parent=1 // pred_check
      _
    $region15: #{tpu_custom_call.1} parent=1 // pred_check_branch
      %36 = sbr.rel (0) target = $region17
    $region16: #{tpu_custom_call.1} parent=1 // pred_region
      %37 = dma.done [#allocation3], 128
    $region17: #{tpu_custom_call.1} parent=1 // pred_fallthru
      _
    // Predicated region
    $region18: #{tpu_custom_call.1} parent=1 // pred_check
      _
    $region19: #{tpu_custom_call.1} parent=1 // pred_check_branch
      %39 = sbr.rel (0) target = $region21
    $region20: #{tpu_custom_call.1} parent=1 // pred_region
      %40 = dma.done [#allocation6], 8192
    $region21: #{tpu_custom_call.1} parent=1 // pred_fallthru
      _
    %v41 = vld [vmem:[#allocation2] sm:$0xff]
    %v42 = vld [vmem:[#allocation5] sm:$0xff]
    %v43 = vld [vmem:[#allocation5 + $0x8] sm:$0xff]
    %v44 = vld [vmem:[#allocation5 + $0x10] sm:$0xff]
    %v45 = vld [vmem:[#allocation5 + $0x18] sm:$0xff]
    %v46 = vld [vmem:[#allocation5 + $0x20] sm:$0xff]
    %v47 = vld [vmem:[#allocation5 + $0x28] sm:$0xff]
    %v48 = vld [vmem:[#allocation5 + $0x30] sm:$0xff]
    %v49 = vld [vmem:[#allocation5 + $0x38] sm:$0xff]
    %v50 = vld [vmem:[#allocation5 + $0x40] sm:$0xff]
    %v51 = vld [vmem:[#allocation5 + $0x48] sm:$0xff]
    %v52 = vld [vmem:[#allocation5 + $0x50] sm:$0xff]
    %v53 = vld [vmem:[#allocation5 + $0x58] sm:$0xff]
    %v54 = vld [vmem:[#allocation5 + $0x60] sm:$0xff]
    %v55 = vld [vmem:[#allocation5 + $0x68] sm:$0xff]
    %v56 = vld [vmem:[#allocation5 + $0x70] sm:$0xff]
    %v57 = vld [vmem:[#allocation5 + $0x78] sm:$0xff]
    %v58 = vld [vmem:[%s2] sm:$0x1]
    %v59 = vlaneseq
    %v60 = vshrl.u32 %v59, 7
    %v61 = vsub.s32 0, %v60
    %v62 = vrot.slane %v58, %v61
    %63 = vmatprep.subr.mxu0 0.0
    %64 = vmatpush1.msra.mxu0 %v42
    %65 = vmatprep.subr.mxu0 0.0
    %66 = vmatpush1.msra.mxu0 %v43
    %67 = vmatprep.subr.mxu0 0.0
    %68 = vmatpush1.msra.mxu0 %v44
    %69 = vmatprep.subr.mxu0 0.0
    %70 = vmatpush1.msra.mxu0 %v45
    %71 = vmatprep.subr.mxu0 0.0
    %72 = vmatpush1.msra.mxu0 %v46
    %73 = vmatprep.subr.mxu0 0.0
    %74 = vmatpush1.msra.mxu0 %v47
    %75 = vmatprep.subr.mxu0 0.0
    %76 = vmatpush1.msra.mxu0 %v48
    %77 = vmatprep.subr.mxu0 0.0
    %78 = vmatpush1.msra.mxu0 %v49
    %79 = vmatprep.subr.mxu0 0.0
    %80 = vmatpush1.msra.mxu0 %v50
    %81 = vmatprep.subr.mxu0 0.0
    %82 = vmatpush1.msra.mxu0 %v51
    %83 = vmatprep.subr.mxu0 0.0
    %84 = vmatpush1.msra.mxu0 %v52
    %85 = vmatprep.subr.mxu0 0.0
    %86 = vmatpush1.msra.mxu0 %v53
    %87 = vmatprep.subr.mxu0 0.0
    %88 = vmatpush1.msra.mxu0 %v54
    %89 = vmatprep.subr.mxu0 0.0
    %90 = vmatpush1.msra.mxu0 %v55
    %91 = vmatprep.subr.mxu0 0.0
    %92 = vmatpush1.msra.mxu0 %v56
    %93 = vmatprep.subr.mxu0 0.0
    %94 = vmatpush1.msra.mxu0 %v57
    %95 = vmatprep.subr.mxu0 0.0
    %96 = vmatpush1.msra.mxu0 0.0
    %97 = vmatprep.subr.mxu0 0.0
    %98 = vmatpush1.msra.mxu0 0.0
    %99 = vmatprep.subr.mxu0 0.0
    %100 = vmatpush1.msra.mxu0 0.0
    %101 = vmatprep.subr.mxu0 0.0
    %102 = vmatpush1.msra.mxu0 0.0
    %103 = vmatprep.subr.mxu0 0.0
    %104 = vmatpush1.msra.mxu0 0.0
    %105 = vmatprep.subr.mxu0 0.0
    %106 = vmatpush1.msra.mxu0 0.0
    %107 = vmatprep.subr.mxu0 0.0
    %108 = vmatpush1.msra.mxu0 0.0
    %109 = vmatprep.subr.mxu0 0.0
    %110 = vmatpush1.msra.mxu0 0.0
    %111 = vmatprep.subr.mxu0 0.0
    %112 = vmatpush1.msra.mxu0 0.0
    %113 = vmatprep.subr.mxu0 0.0
    %114 = vmatpush1.msra.mxu0 0.0
    %115 = vmatprep.subr.mxu0 0.0
    %116 = vmatpush1.msra.mxu0 0.0
    %117 = vmatprep.subr.mxu0 0.0
    %118 = vmatpush1.msra.mxu0 0.0
    %119 = vmatprep.subr.mxu0 0.0
    %120 = vmatpush1.msra.mxu0 0.0
    %121 = vmatprep.subr.mxu0 0.0
    %122 = vmatpush1.msra.mxu0 0.0
    %123 = vmatprep.subr.mxu0 0.0
    %124 = vmatpush1.msra.mxu0 0.0
    %125 = vmatprep.subr.mxu0 0.0
    %126 = vmatpush1.msra.mxu0 0.0
    %127 = vmatprep.mubr.f32.mxu0 0.0
    %128 = vmatmul.mubr.f32.gmra.mrb[0].mxu0 %v41
    %v129 = vpop.f32.mrb[0].mxu0
    %v130 = vadd.f32 %v62, %v129
    %v131 = vpop.f32.mrb[0].mxu0
    %132 = vdwg.mxu0
    %vm133 = vcmp.ge.f32.partialorder %v130, 0.0
    %v134 = vsel %vm133, 1.4142135, 0.28284273
    %v135 = vmul.f32 %v130, %v134
    %s136 = scalar_lea.vmem [#allocation5], 128
    %v137 = vld [vmem:[%s136] sm:$0xff]
    %v138 = vld [vmem:[%s136 + $0x8] sm:$0xff]
    %v139 = vld [vmem:[%s136 + $0x10] sm:$0xff]
    %v140 = vld [vmem:[%s136 + $0x18] sm:$0xff]
    %v141 = vld [vmem:[%s136 + $0x20] sm:$0xff]
    %v142 = vld [vmem:[%s136 + $0x28] sm:$0xff]
    %v143 = vld [vmem:[%s136 + $0x30] sm:$0xff]
    %v144 = vld [vmem:[%s136 + $0x38] sm:$0xff]
    %v145 = vld [vmem:[%s136 + $0x40] sm:$0xff]
    %v146 = vld [vmem:[%s136 + $0x48] sm:$0xff]
    %v147 = vld [vmem:[%s136 + $0x50] sm:$0xff]
    %v148 = vld [vmem:[%s136 + $0x58] sm:$0xff]
    %v149 = vld [vmem:[%s136 + $0x60] sm:$0xff]
    %v150 = vld [vmem:[%s136 + $0x68] sm:$0xff]
    %v151 = vld [vmem:[%s136 + $0x70] sm:$0xff]
    %v152 = vld [vmem:[%s136 + $0x78] sm:$0xff]
    %v153 = vld [vmem:[%s2 + $0x1] sm:$0x1]
    %v154 = vlaneseq
    %v155 = vshrl.u32 %v154, 7
    %v156 = vsub.s32 0, %v155
    %v157 = vrot.slane %v153, %v156
    %158 = vmatprep.subr.mxu0 0.0
    %159 = vmatpush1.msra.mxu0 %v137
    %160 = vmatprep.subr.mxu0 0.0
    %161 = vmatpush1.msra.mxu0 %v138
    %162 = vmatprep.subr.mxu0 0.0
    %163 = vmatpush1.msra.mxu0 %v139
    %164 = vmatprep.subr.mxu0 0.0
    %165 = vmatpush1.msra.mxu0 %v140
    %166 = vmatprep.subr.mxu0 0.0
    %167 = vmatpush1.msra.mxu0 %v141
    %168 = vmatprep.subr.mxu0 0.0
    %169 = vmatpush1.msra.mxu0 %v142
    %170 = vmatprep.subr.mxu0 0.0
    %171 = vmatpush1.msra.mxu0 %v143
    %172 = vmatprep.subr.mxu0 0.0
    %173 = vmatpush1.msra.mxu0 %v144
    %174 = vmatprep.subr.mxu0 0.0
    %175 = vmatpush1.msra.mxu0 %v145
    %176 = vmatprep.subr.mxu0 0.0
    %177 = vmatpush1.msra.mxu0 %v146
    %178 = vmatprep.subr.mxu0 0.0
    %179 = vmatpush1.msra.mxu0 %v147
    %180 = vmatprep.subr.mxu0 0.0
    %181 = vmatpush1.msra.mxu0 %v148
    %182 = vmatprep.subr.mxu0 0.0
    %183 = vmatpush1.msra.mxu0 %v149
    %184 = vmatprep.subr.mxu0 0.0
    %185 = vmatpush1.msra.mxu0 %v150
    %186 = vmatprep.subr.mxu0 0.0
    %187 = vmatpush1.msra.mxu0 %v151
    %188 = vmatprep.subr.mxu0 0.0
    %189 = vmatpush1.msra.mxu0 %v152
    %190 = vmatprep.subr.mxu0 0.0
    %191 = vmatpush1.msra.mxu0 0.0
    %192 = vmatprep.subr.mxu0 0.0
    %193 = vmatpush1.msra.mxu0 0.0
    %194 = vmatprep.subr.mxu0 0.0
    %195 = vmatpush1.msra.mxu0 0.0
    %196 = vmatprep.subr.mxu0 0.0
    %197 = vmatpush1.msra.mxu0 0.0
    %198 = vmatprep.subr.mxu0 0.0
    %199 = vmatpush1.msra.mxu0 0.0
    %200 = vmatprep.subr.mxu0 0.0
    %201 = vmatpush1.msra.mxu0 0.0
    %202 = vmatprep.subr.mxu0 0.0
    %203 = vmatpush1.msra.mxu0 0.0
    %204 = vmatprep.subr.mxu0 0.0
    %205 = vmatpush1.msra.mxu0 0.0
    %206 = vmatprep.subr.mxu0 0.0
    %207 = vmatpush1.msra.mxu0 0.0
    %208 = vmatprep.subr.mxu0 0.0
    %209 = vmatpush1.msra.mxu0 0.0
    %210 = vmatprep.subr.mxu0 0.0
    %211 = vmatpush1.msra.mxu0 0.0
    %212 = vmatprep.subr.mxu0 0.0
    %213 = vmatpush1.msra.mxu0 0.0
    %214 = vmatprep.subr.mxu0 0.0
    %215 = vmatpush1.msra.mxu0 0.0
    %216 = vmatprep.subr.mxu0 0.0
    %217 = vmatpush1.msra.mxu0 0.0
    %218 = vmatprep.subr.mxu0 0.0
    %219 = vmatpush1.msra.mxu0 0.0
    %220 = vmatprep.subr.mxu0 0.0
    %221 = vmatpush1.msra.mxu0 0.0
    %222 = vmatprep.mubr.f32.mxu0 0.0
    %223 = vmatmul.mubr.f32.gmra.mrb[0].mxu0 %v135
    %v224 = vpop.f32.mrb[0].mxu0
    %v225 = vadd.f32 %v157, %v224
    %v226 = vpop.f32.mrb[0].mxu0
    %227 = vdwg.mxu0
    %vm228 = vcmp.ge.f32.partialorder %v225, 0.0
    %v229 = vsel %vm228, 1.4142135, 0.28284273
    %v230 = vmul.f32 %v225, %v229
    %s231 = scalar_lea.vmem [#allocation5], 256
    %v232 = vld [vmem:[%s231] sm:$0xff]
    %v233 = vld [vmem:[%s231 + $0x8] sm:$0xff]
    %v234 = vld [vmem:[%s231 + $0x10] sm:$0xff]
    %v235 = vld [vmem:[%s231 + $0x18] sm:$0xff]
    %v236 = vld [vmem:[%s231 + $0x20] sm:$0xff]
    %v237 = vld [vmem:[%s231 + $0x28] sm:$0xff]
    %v238 = vld [vmem:[%s231 + $0x30] sm:$0xff]
    %v239 = vld [vmem:[%s231 + $0x38] sm:$0xff]
    %v240 = vld [vmem:[%s231 + $0x40] sm:$0xff]
    %v241 = vld [vmem:[%s231 + $0x48] sm:$0xff]
    %v242 = vld [vmem:[%s231 + $0x50] sm:$0xff]
    %v243 = vld [vmem:[%s231 + $0x58] sm:$0xff]
    %v244 = vld [vmem:[%s231 + $0x60] sm:$0xff]
    %v245 = vld [vmem:[%s231 + $0x68] sm:$0xff]
    %v246 = vld [vmem:[%s231 + $0x70] sm:$0xff]
    %v247 = vld [vmem:[%s231 + $0x78] sm:$0xff]
    %v248 = vld [vmem:[%s2 + $0x2] sm:$0x1]
    %v249 = vlaneseq
    %v250 = vshrl.u32 %v249, 7
    %v251 = vsub.s32 0, %v250
    %v252 = vrot.slane %v248, %v251
    %253 = vmatprep.subr.mxu0 0.0
    %254 = vmatpush1.msra.mxu0 %v232
    %255 = vmatprep.subr.mxu0 0.0
    %256 = vmatpush1.msra.mxu0 %v233
    %257 = vmatprep.subr.mxu0 0.0
    %258 = vmatpush1.msra.mxu0 %v234
    %259 = vmatprep.subr.mxu0 0.0
    %260 = vmatpush1.msra.mxu0 %v235
    %261 = vmatprep.subr.mxu0 0.0
    %262 = vmatpush1.msra.mxu0 %v236
    %263 = vmatprep.subr.mxu0 0.0
    %264 = vmatpush1.msra.mxu0 %v237
    %265 = vmatprep.subr.mxu0 0.0
    %266 = vmatpush1.msra.mxu0 %v238
    %267 = vmatprep.subr.mxu0 0.0
    %268 = vmatpush1.msra.mxu0 %v239
    %269 = vmatprep.subr.mxu0 0.0
    %270 = vmatpush1.msra.mxu0 %v240
    %271 = vmatprep.subr.mxu0 0.0
    %272 = vmatpush1.msra.mxu0 %v241
    %273 = vmatprep.subr.mxu0 0.0
    %274 = vmatpush1.msra.mxu0 %v242
    %275 = vmatprep.subr.mxu0 0.0
    %276 = vmatpush1.msra.mxu0 %v243
    %277 = vmatprep.subr.mxu0 0.0
    %278 = vmatpush1.msra.mxu0 %v244
    %279 = vmatprep.subr.mxu0 0.0
    %280 = vmatpush1.msra.mxu0 %v245
    %281 = vmatprep.subr.mxu0 0.0
    %282 = vmatpush1.msra.mxu0 %v246
    %283 = vmatprep.subr.mxu0 0.0
    %284 = vmatpush1.msra.mxu0 %v247
    %285 = vmatprep.subr.mxu0 0.0
    %286 = vmatpush1.msra.mxu0 0.0
    %287 = vmatprep.subr.mxu0 0.0
    %288 = vmatpush1.msra.mxu0 0.0
    %289 = vmatprep.subr.mxu0 0.0
    %290 = vmatpush1.msra.mxu0 0.0
    %291 = vmatprep.subr.mxu0 0.0
    %292 = vmatpush1.msra.mxu0 0.0
    %293 = vmatprep.subr.mxu0 0.0
    %294 = vmatpush1.msra.mxu0 0.0
    %295 = vmatprep.subr.mxu0 0.0
    %296 = vmatpush1.msra.mxu0 0.0
    %297 = vmatprep.subr.mxu0 0.0
    %298 = vmatpush1.msra.mxu0 0.0
    %299 = vmatprep.subr.mxu0 0.0
    %300 = vmatpush1.msra.mxu0 0.0
    %301 = vmatprep.subr.mxu0 0.0
    %302 = vmatpush1.msra.mxu0 0.0
    %303 = vmatprep.subr.mxu0 0.0
    %304 = vmatpush1.msra.mxu0 0.0
    %305 = vmatprep.subr.mxu0 0.0
    %306 = vmatpush1.msra.mxu0 0.0
    %307 = vmatprep.subr.mxu0 0.0
    %308 = vmatpush1.msra.mxu0 0.0
    %309 = vmatprep.subr.mxu0 0.0
    %310 = vmatpush1.msra.mxu0 0.0
    %311 = vmatprep.subr.mxu0 0.0
    %312 = vmatpush1.msra.mxu0 0.0
    %313 = vmatprep.subr.mxu0 0.0
    %314 = vmatpush1.msra.mxu0 0.0
    %315 = vmatprep.subr.mxu0 0.0
    %316 = vmatpush1.msra.mxu0 0.0
    %317 = vmatprep.mubr.f32.mxu0 0.0
    %318 = vmatmul.mubr.f32.gmra.mrb[0].mxu0 %v230
    %v319 = vpop.f32.mrb[0].mxu0
    %v320 = vadd.f32 %v252, %v319
    %v321 = vpop.f32.mrb[0].mxu0
    %322 = vdwg.mxu0
    %vm323 = vcmp.ge.f32.partialorder %v320, 0.0
    %v324 = vsel %vm323, 1.4142135, 0.28284273
    %v325 = vmul.f32 %v320, %v324
    %s326 = scalar_lea.vmem [#allocation5], 384
    %v327 = vld [vmem:[%s326] sm:$0xff]
    %v328 = vld [vmem:[%s326 + $0x8] sm:$0xff]
    %v329 = vld [vmem:[%s326 + $0x10] sm:$0xff]
    %v330 = vld [vmem:[%s326 + $0x18] sm:$0xff]
    %v331 = vld [vmem:[%s326 + $0x20] sm:$0xff]
    %v332 = vld [vmem:[%s326 + $0x28] sm:$0xff]
    %v333 = vld [vmem:[%s326 + $0x30] sm:$0xff]
    %v334 = vld [vmem:[%s326 + $0x38] sm:$0xff]
    %v335 = vld [vmem:[%s326 + $0x40] sm:$0xff]
    %v336 = vld [vmem:[%s326 + $0x48] sm:$0xff]
    %v337 = vld [vmem:[%s326 + $0x50] sm:$0xff]
    %v338 = vld [vmem:[%s326 + $0x58] sm:$0xff]
    %v339 = vld [vmem:[%s326 + $0x60] sm:$0xff]
    %v340 = vld [vmem:[%s326 + $0x68] sm:$0xff]
    %v341 = vld [vmem:[%s326 + $0x70] sm:$0xff]
    %v342 = vld [vmem:[%s326 + $0x78] sm:$0xff]
    %v343 = vld [vmem:[%s2 + $0x3] sm:$0x1]
    %v344 = vlaneseq
    %v345 = vshrl.u32 %v344, 7
    %v346 = vsub.s32 0, %v345
    %v347 = vrot.slane %v343, %v346
    %348 = vmatprep.subr.mxu0 0.0
    %349 = vmatpush1.msra.mxu0 %v327
    %350 = vmatprep.subr.mxu0 0.0
    %351 = vmatpush1.msra.mxu0 %v328
    %352 = vmatprep.subr.mxu0 0.0
    %353 = vmatpush1.msra.mxu0 %v329
    %354 = vmatprep.subr.mxu0 0.0
    %355 = vmatpush1.msra.mxu0 %v330
    %356 = vmatprep.subr.mxu0 0.0
    %357 = vmatpush1.msra.mxu0 %v331
    %358 = vmatprep.subr.mxu0 0.0
    %359 = vmatpush1.msra.mxu0 %v332
    %360 = vmatprep.subr.mxu0 0.0
    %361 = vmatpush1.msra.mxu0 %v333
    %362 = vmatprep.subr.mxu0 0.0
    %363 = vmatpush1.msra.mxu0 %v334
    %364 = vmatprep.subr.mxu0 0.0
    %365 = vmatpush1.msra.mxu0 %v335
    %366 = vmatprep.subr.mxu0 0.0
    %367 = vmatpush1.msra.mxu0 %v336
    %368 = vmatprep.subr.mxu0 0.0
    %369 = vmatpush1.msra.mxu0 %v337
    %370 = vmatprep.subr.mxu0 0.0
    %371 = vmatpush1.msra.mxu0 %v338
    %372 = vmatprep.subr.mxu0 0.0
    %373 = vmatpush1.msra.mxu0 %v339
    %374 = vmatprep.subr.mxu0 0.0
    %375 = vmatpush1.msra.mxu0 %v340
    %376 = vmatprep.subr.mxu0 0.0
    %377 = vmatpush1.msra.mxu0 %v341
    %378 = vmatprep.subr.mxu0 0.0
    %379 = vmatpush1.msra.mxu0 %v342
    %380 = vmatprep.subr.mxu0 0.0
    %381 = vmatpush1.msra.mxu0 0.0
    %382 = vmatprep.subr.mxu0 0.0
    %383 = vmatpush1.msra.mxu0 0.0
    %384 = vmatprep.subr.mxu0 0.0
    %385 = vmatpush1.msra.mxu0 0.0
    %386 = vmatprep.subr.mxu0 0.0
    %387 = vmatpush1.msra.mxu0 0.0
    %388 = vmatprep.subr.mxu0 0.0
    %389 = vmatpush1.msra.mxu0 0.0
    %390 = vmatprep.subr.mxu0 0.0
    %391 = vmatpush1.msra.mxu0 0.0
    %392 = vmatprep.subr.mxu0 0.0
    %393 = vmatpush1.msra.mxu0 0.0
    %394 = vmatprep.subr.mxu0 0.0
    %395 = vmatpush1.msra.mxu0 0.0
    %396 = vmatprep.subr.mxu0 0.0
    %397 = vmatpush1.msra.mxu0 0.0
    %398 = vmatprep.subr.mxu0 0.0
    %399 = vmatpush1.msra.mxu0 0.0
    %400 = vmatprep.subr.mxu0 0.0
    %401 = vmatpush1.msra.mxu0 0.0
    %402 = vmatprep.subr.mxu0 0.0
    %403 = vmatpush1.msra.mxu0 0.0
    %404 = vmatprep.subr.mxu0 0.0
    %405 = vmatpush1.msra.mxu0 0.0
    %406 = vmatprep.subr.mxu0 0.0
    %407 = vmatpush1.msra.mxu0 0.0
    %408 = vmatprep.subr.mxu0 0.0
    %409 = vmatpush1.msra.mxu0 0.0
    %410 = vmatprep.subr.mxu0 0.0
    %411 = vmatpush1.msra.mxu0 0.0
    %412 = vmatprep.mubr.f32.mxu0 0.0
    %413 = vmatmul.mubr.f32.gmra.mrb[0].mxu0 %v325
    %v414 = vpop.f32.mrb[0].mxu0
    %v415 = vadd.f32 %v347, %v414
    %v416 = vpop.f32.mrb[0].mxu0
    %417 = vdwg.mxu0
    %418 = vst [vmem:[#allocation7] sm:$0xff] %v415
    // Predicated region
    $region22: #{tpu_custom_call.1} parent=1 // pred_check
      _
    $region23: #{tpu_custom_call.1} parent=1 // pred_check_branch
      %420 = sbr.rel (0) target = $region25
    $region24: #{tpu_custom_call.1} parent=1 // pred_region
      %s422 = ssub.s32 128, 128
      %423 = vsyncadd [#allocation4], %s422
      %s425 = sshll.u32 [#allocation7], 4
      %s426 = int_to_ptr.vmem [resolvable:$true] %s425
      %428 = dma.vmem_to_hbm [thread:$0]  %s426, 128, %s3, [#allocation4]
    $region25: #{tpu_custom_call.1} parent=1 // pred_fallthru
      _
    // Predicated region
    $region26: #{tpu_custom_call.1} parent=1 // pred_check
      _
    $region27: #{tpu_custom_call.1} parent=1 // pred_check_branch
      %430 = sbr.rel (0) target = $region29
    $region28: #{tpu_custom_call.1} parent=1 // pred_region
      %431 = dma.done [#allocation4], 128
    $region29: #{tpu_custom_call.1} parent=1 // pred_fallthru
      _
    %432 = vsyncpa [#allocation3], 1
    %433 = vsyncpa [#allocation6], 1
    %434 = vsyncpa [#allocation4], 1

// kernel: tpu_custom_call.1
$region0: #{tpu_custom_call.1}
  #allocation0 [shape = 'u32[]', space=smem, size = 0x4, offset = 0x4, fixed_abs, tag = 'smem constant byte address 0x4 - core index']
  #allocation1 [shape = 'u32[144,128]{1,0:T(1,128)}', space=vmem, size = 0x12000, scoped, tag = 'internal scratch']
  %s0 = inlined_call_operand.hbm [shape: f32[8,128], index: 0, kind: input, shape index: {}]
  %s1 = inlined_call_operand.hbm [shape: f32[4,128,128], index: 1, kind: input, shape index: {}]
  %s2 = inlined_call_operand.vmem [shape: f32[4,128], index: 2, kind: input, shape index: {}]
  %s3 = inlined_call_operand.hbm [shape: f32[8,128], index: 3, kind: output, shape index: {}]
  %s4 = sld [smem:[#allocation0]]
  $region30: #{tpu_custom_call.1} parent=0
    _
  %s6 = ssub.s32 1, %s4
  %s7 = scalar_select 0, %s6, %s4
  $region1: #{tpu_custom_call.1} parent=0
    #allocation2 [shape = 'u8[4096]{0}', space=vmem, size = 0x1000, scoped, tag = 'input window, operand 0, single buffered']
    #allocation3 [shape = 's32[1]{0}', space=sflag, size = 0x4, scoped, tag = 'scoped memory for tpu_custom_call.1']
    #allocation4 [shape = 's32[1]{0}', space=sflag, size = 0x4, scoped, tag = 'scoped memory for tpu_custom_call.1']
    #allocation5 [shape = 'u8[262144]{0}', space=vmem, size = 0x40000, scoped, tag = 'input window, operand 1, single buffered']
    #allocation6 [shape = 's32[1]{0}', space=sflag, size = 0x4, scoped, tag = 'scoped memory for tpu_custom_call.1']
    #allocation7 [shape = 'u8[4096]{0}', space=vmem, size = 0x1000, scoped, tag = 'output window, operand 0, single buffered']
    %8 = vsyncpa [#allocation3], 0
    %9 = vsyncpa [#allocation6], 0
    %10 = vsyncpa [#allocation4], 0
    // Predicated region
    $region2: #{tpu_custom_call.1} parent=1 // pred_check
      _
    $region3: #{tpu_custom_call.1} parent=1 // pred_check_branch
      %12 = sbr.rel (0) target = $region5
    $region4: #{tpu_custom_call.1} parent=1 // pred_region
      %s14 = ssub.s32 128, 128
      %15 = vsyncadd [#allocation3], %s14
      %s17 = sshll.u32 [#allocation2], 4
      %s18 = int_to_ptr.vmem [resolvable:$true] %s17
      %20 = dma.hbm_to_vmem [thread:$0]  %s0, 128, %s18, [#allocation3]
    $region5: #{tpu_custom_call.1} parent=1 // pred_fallthru
      _
    // Predicated region
    $region6: #{tpu_custom_call.1} parent=1 // pred_check
      _
    $region7: #{tpu_custom_call.1} parent=1 // pred_check_branch
      %22 = sbr.rel (0) target = $region9
    $region8: #{tpu_custom_call.1} parent=1 // pred_region
      %s24 = ssub.s32 8192, 8192
      %25 = vsyncadd [#allocation6], %s24
      %s26 = sshll.u32 [#allocation5], 4
      %s27 = int_to_ptr.vmem [resolvable:$true] %s26
      %32 = dma.hbm_to_vmem [thread:$0]  %s1, 8192, %s27, [#allocation6], 128, 128, 8
    $region9: #{tpu_custom_call.1} parent=1 // pred_fallthru
      _
    // Predicated region
    $region10: #{tpu_custom_call.1} parent=1 // pred_check
      _
    $region11: #{tpu_custom_call.1} parent=1 // pred_check_branch
      %34 = sbr.rel (0) target = $region13
    $region12: #{tpu_custom_call.1} parent=1 // pred_region
      _
    $region13: #{tpu_custom_call.1} parent=1 // pred_fallthru
      _
    // Predicated region
    $region14: #{tpu_custom_call.1} parent=1 // pred_check
      _
    $region15: #{tpu_custom_call.1} parent=1 // pred_check_branch
      %36 = sbr.rel (0) target = $region17
    $region16: #{tpu_custom_call.1} parent=1 // pred_region
      %37 = dma.done [#allocation3], 128
    $region17: #{tpu_custom_call.1} parent=1 // pred_fallthru
      _
    // Predicated region
    $region18: #{tpu_custom_call.1} parent=1 // pred_check
      _
    $region19: #{tpu_custom_call.1} parent=1 // pred_check_branch
      %39 = sbr.rel (0) target = $region21
    $region20: #{tpu_custom_call.1} parent=1 // pred_region
      %40 = dma.done [#allocation6], 8192
    $region21: #{tpu_custom_call.1} parent=1 // pred_fallthru
      _
    %v41 = vld [vmem:[#allocation2] sm:$0xff]
    %v42 = vld [vmem:[#allocation5] sm:$0xff]
    %v43 = vld [vmem:[#allocation5 + $0x8] sm:$0xff]
    %v44 = vld [vmem:[#allocation5 + $0x10] sm:$0xff]
    %v45 = vld [vmem:[#allocation5 + $0x18] sm:$0xff]
    %v46 = vld [vmem:[#allocation5 + $0x20] sm:$0xff]
    %v47 = vld [vmem:[#allocation5 + $0x28] sm:$0xff]
    %v48 = vld [vmem:[#allocation5 + $0x30] sm:$0xff]
    %v49 = vld [vmem:[#allocation5 + $0x38] sm:$0xff]
    %v50 = vld [vmem:[#allocation5 + $0x40] sm:$0xff]
    %v51 = vld [vmem:[#allocation5 + $0x48] sm:$0xff]
    %v52 = vld [vmem:[#allocation5 + $0x50] sm:$0xff]
    %v53 = vld [vmem:[#allocation5 + $0x58] sm:$0xff]
    %v54 = vld [vmem:[#allocation5 + $0x60] sm:$0xff]
    %v55 = vld [vmem:[#allocation5 + $0x68] sm:$0xff]
    %v56 = vld [vmem:[#allocation5 + $0x70] sm:$0xff]
    %v57 = vld [vmem:[#allocation5 + $0x78] sm:$0xff]
    %v58 = vld [vmem:[%s2] sm:$0x1]
    %v59 = vlaneseq
    %v60 = vshrl.u32 %v59, 7
    %v61 = vsub.s32 0, %v60
    %v62 = vrot.slane %v58, %v61
    %63 = vmatprep.subr.mxu0 0.0
    %64 = vmatpush1.msra.mxu0 %v42
    %65 = vmatprep.subr.mxu0 0.0
    %66 = vmatpush1.msra.mxu0 %v43
    %67 = vmatprep.subr.mxu0 0.0
    %68 = vmatpush1.msra.mxu0 %v44
    %69 = vmatprep.subr.mxu0 0.0
    %70 = vmatpush1.msra.mxu0 %v45
    %71 = vmatprep.subr.mxu0 0.0
    %72 = vmatpush1.msra.mxu0 %v46
    %73 = vmatprep.subr.mxu0 0.0
    %74 = vmatpush1.msra.mxu0 %v47
    %75 = vmatprep.subr.mxu0 0.0
    %76 = vmatpush1.msra.mxu0 %v48
    %77 = vmatprep.subr.mxu0 0.0
    %78 = vmatpush1.msra.mxu0 %v49
    %79 = vmatprep.subr.mxu0 0.0
    %80 = vmatpush1.msra.mxu0 %v50
    %81 = vmatprep.subr.mxu0 0.0
    %82 = vmatpush1.msra.mxu0 %v51
    %83 = vmatprep.subr.mxu0 0.0
    %84 = vmatpush1.msra.mxu0 %v52
    %85 = vmatprep.subr.mxu0 0.0
    %86 = vmatpush1.msra.mxu0 %v53
    %87 = vmatprep.subr.mxu0 0.0
    %88 = vmatpush1.msra.mxu0 %v54
    %89 = vmatprep.subr.mxu0 0.0
    %90 = vmatpush1.msra.mxu0 %v55
    %91 = vmatprep.subr.mxu0 0.0
    %92 = vmatpush1.msra.mxu0 %v56
    %93 = vmatprep.subr.mxu0 0.0
    %94 = vmatpush1.msra.mxu0 %v57
    %95 = vmatprep.subr.mxu0 0.0
    %96 = vmatpush1.msra.mxu0 0.0
    %97 = vmatprep.subr.mxu0 0.0
    %98 = vmatpush1.msra.mxu0 0.0
    %99 = vmatprep.subr.mxu0 0.0
    %100 = vmatpush1.msra.mxu0 0.0
    %101 = vmatprep.subr.mxu0 0.0
    %102 = vmatpush1.msra.mxu0 0.0
    %103 = vmatprep.subr.mxu0 0.0
    %104 = vmatpush1.msra.mxu0 0.0
    %105 = vmatprep.subr.mxu0 0.0
    %106 = vmatpush1.msra.mxu0 0.0
    %107 = vmatprep.subr.mxu0 0.0
    %108 = vmatpush1.msra.mxu0 0.0
    %109 = vmatprep.subr.mxu0 0.0
    %110 = vmatpush1.msra.mxu0 0.0
    %111 = vmatprep.subr.mxu0 0.0
    %112 = vmatpush1.msra.mxu0 0.0
    %113 = vmatprep.subr.mxu0 0.0
    %114 = vmatpush1.msra.mxu0 0.0
    %115 = vmatprep.subr.mxu0 0.0
    %116 = vmatpush1.msra.mxu0 0.0
    %117 = vmatprep.subr.mxu0 0.0
    %118 = vmatpush1.msra.mxu0 0.0
    %119 = vmatprep.subr.mxu0 0.0
    %120 = vmatpush1.msra.mxu0 0.0
    %121 = vmatprep.subr.mxu0 0.0
    %122 = vmatpush1.msra.mxu0 0.0
    %123 = vmatprep.subr.mxu0 0.0
    %124 = vmatpush1.msra.mxu0 0.0
    %125 = vmatprep.subr.mxu0 0.0
    %126 = vmatpush1.msra.mxu0 0.0
    %127 = vmatprep.mubr.f32.mxu0 0.0
    %128 = vmatmul.mubr.f32.gmra.mrb[0].mxu0 %v41
    %v129 = vpop.f32.mrb[0].mxu0
    %v130 = vadd.f32 %v62, %v129
    %v131 = vpop.f32.mrb[0].mxu0
    %132 = vdwg.mxu0
    %vm133 = vcmp.ge.f32.partialorder %v130, 0.0
    %v134 = vsel %vm133, 1.4142135, 0.28284273
    %v135 = vmul.f32 %v130, %v134
    %s136 = scalar_lea.vmem [#allocation5], 128
    %v137 = vld [vmem:[%s136] sm:$0xff]
    %v138 = vld [vmem:[%s136 + $0x8] sm:$0xff]
    %v139 = vld [vmem:[%s136 + $0x10] sm:$0xff]
    %v140 = vld [vmem:[%s136 + $0x18] sm:$0xff]
    %v141 = vld [vmem:[%s136 + $0x20] sm:$0xff]
    %v142 = vld [vmem:[%s136 + $0x28] sm:$0xff]
    %v143 = vld [vmem:[%s136 + $0x30] sm:$0xff]
    %v144 = vld [vmem:[%s136 + $0x38] sm:$0xff]
    %v145 = vld [vmem:[%s136 + $0x40] sm:$0xff]
    %v146 = vld [vmem:[%s136 + $0x48] sm:$0xff]
    %v147 = vld [vmem:[%s136 + $0x50] sm:$0xff]
    %v148 = vld [vmem:[%s136 + $0x58] sm:$0xff]
    %v149 = vld [vmem:[%s136 + $0x60] sm:$0xff]
    %v150 = vld [vmem:[%s136 + $0x68] sm:$0xff]
    %v151 = vld [vmem:[%s136 + $0x70] sm:$0xff]
    %v152 = vld [vmem:[%s136 + $0x78] sm:$0xff]
    %v153 = vld [vmem:[%s2 + $0x1] sm:$0x1]
    %v154 = vlaneseq
    %v155 = vshrl.u32 %v154, 7
    %v156 = vsub.s32 0, %v155
    %v157 = vrot.slane %v153, %v156
    %158 = vmatprep.subr.mxu0 0.0
    %159 = vmatpush1.msra.mxu0 %v137
    %160 = vmatprep.subr.mxu0 0.0
    %161 = vmatpush1.msra.mxu0 %v138
    %162 = vmatprep.subr.mxu0 0.0
    %163 = vmatpush1.msra.mxu0 %v139
    %164 = vmatprep.subr.mxu0 0.0
    %165 = vmatpush1.msra.mxu0 %v140
    %166 = vmatprep.subr.mxu0 0.0
    %167 = vmatpush1.msra.mxu0 %v141
    %168 = vmatprep.subr.mxu0 0.0
    %169 = vmatpush1.msra.mxu0 %v142
    %170 = vmatprep.subr.mxu0 0.0
    %171 = vmatpush1.msra.mxu0 %v143
    %172 = vmatprep.subr.mxu0 0.0
    %173 = vmatpush1.msra.mxu0 %v144
    %174 = vmatprep.subr.mxu0 0.0
    %175 = vmatpush1.msra.mxu0 %v145
    %176 = vmatprep.subr.mxu0 0.0
    %177 = vmatpush1.msra.mxu0 %v146
    %178 = vmatprep.subr.mxu0 0.0
    %179 = vmatpush1.msra.mxu0 %v147
    %180 = vmatprep.subr.mxu0 0.0
    %181 = vmatpush1.msra.mxu0 %v148
    %182 = vmatprep.subr.mxu0 0.0
    %183 = vmatpush1.msra.mxu0 %v149
    %184 = vmatprep.subr.mxu0 0.0
    %185 = vmatpush1.msra.mxu0 %v150
    %186 = vmatprep.subr.mxu0 0.0
    %187 = vmatpush1.msra.mxu0 %v151
    %188 = vmatprep.subr.mxu0 0.0
    %189 = vmatpush1.msra.mxu0 %v152
    %190 = vmatprep.subr.mxu0 0.0
    %191 = vmatpush1.msra.mxu0 0.0
    %192 = vmatprep.subr.mxu0 0.0
    %193 = vmatpush1.msra.mxu0 0.0
    %194 = vmatprep.subr.mxu0 0.0
    %195 = vmatpush1.msra.mxu0 0.0
    %196 = vmatprep.subr.mxu0 0.0
    %197 = vmatpush1.msra.mxu0 0.0
    %198 = vmatprep.subr.mxu0 0.0
    %199 = vmatpush1.msra.mxu0 0.0
    %200 = vmatprep.subr.mxu0 0.0
    %201 = vmatpush1.msra.mxu0 0.0
    %202 = vmatprep.subr.mxu0 0.0
    %203 = vmatpush1.msra.mxu0 0.0
    %204 = vmatprep.subr.mxu0 0.0
    %205 = vmatpush1.msra.mxu0 0.0
    %206 = vmatprep.subr.mxu0 0.0
    %207 = vmatpush1.msra.mxu0 0.0
    %208 = vmatprep.subr.mxu0 0.0
    %209 = vmatpush1.msra.mxu0 0.0
    %210 = vmatprep.subr.mxu0 0.0
    %211 = vmatpush1.msra.mxu0 0.0
    %212 = vmatprep.subr.mxu0 0.0
    %213 = vmatpush1.msra.mxu0 0.0
    %214 = vmatprep.subr.mxu0 0.0
    %215 = vmatpush1.msra.mxu0 0.0
    %216 = vmatprep.subr.mxu0 0.0
    %217 = vmatpush1.msra.mxu0 0.0
    %218 = vmatprep.subr.mxu0 0.0
    %219 = vmatpush1.msra.mxu0 0.0
    %220 = vmatprep.subr.mxu0 0.0
    %221 = vmatpush1.msra.mxu0 0.0
    %222 = vmatprep.mubr.f32.mxu0 0.0
    %223 = vmatmul.mubr.f32.gmra.mrb[0].mxu0 %v135
    %v224 = vpop.f32.mrb[0].mxu0
    %v225 = vadd.f32 %v157, %v224
    %v226 = vpop.f32.mrb[0].mxu0
    %227 = vdwg.mxu0
    %vm228 = vcmp.ge.f32.partialorder %v225, 0.0
    %v229 = vsel %vm228, 1.4142135, 0.28284273
    %v230 = vmul.f32 %v225, %v229
    %s231 = scalar_lea.vmem [#allocation5], 256
    %v232 = vld [vmem:[%s231] sm:$0xff]
    %v233 = vld [vmem:[%s231 + $0x8] sm:$0xff]
    %v234 = vld [vmem:[%s231 + $0x10] sm:$0xff]
    %v235 = vld [vmem:[%s231 + $0x18] sm:$0xff]
    %v236 = vld [vmem:[%s231 + $0x20] sm:$0xff]
    %v237 = vld [vmem:[%s231 + $0x28] sm:$0xff]
    %v238 = vld [vmem:[%s231 + $0x30] sm:$0xff]
    %v239 = vld [vmem:[%s231 + $0x38] sm:$0xff]
    %v240 = vld [vmem:[%s231 + $0x40] sm:$0xff]
    %v241 = vld [vmem:[%s231 + $0x48] sm:$0xff]
    %v242 = vld [vmem:[%s231 + $0x50] sm:$0xff]
    %v243 = vld [vmem:[%s231 + $0x58] sm:$0xff]
    %v244 = vld [vmem:[%s231 + $0x60] sm:$0xff]
    %v245 = vld [vmem:[%s231 + $0x68] sm:$0xff]
    %v246 = vld [vmem:[%s231 + $0x70] sm:$0xff]
    %v247 = vld [vmem:[%s231 + $0x78] sm:$0xff]
    %v248 = vld [vmem:[%s2 + $0x2] sm:$0x1]
    %v249 = vlaneseq
    %v250 = vshrl.u32 %v249, 7
    %v251 = vsub.s32 0, %v250
    %v252 = vrot.slane %v248, %v251
    %253 = vmatprep.subr.mxu0 0.0
    %254 = vmatpush1.msra.mxu0 %v232
    %255 = vmatprep.subr.mxu0 0.0
    %256 = vmatpush1.msra.mxu0 %v233
    %257 = vmatprep.subr.mxu0 0.0
    %258 = vmatpush1.msra.mxu0 %v234
    %259 = vmatprep.subr.mxu0 0.0
    %260 = vmatpush1.msra.mxu0 %v235
    %261 = vmatprep.subr.mxu0 0.0
    %262 = vmatpush1.msra.mxu0 %v236
    %263 = vmatprep.subr.mxu0 0.0
    %264 = vmatpush1.msra.mxu0 %v237
    %265 = vmatprep.subr.mxu0 0.0
    %266 = vmatpush1.msra.mxu0 %v238
    %267 = vmatprep.subr.mxu0 0.0
    %268 = vmatpush1.msra.mxu0 %v239
    %269 = vmatprep.subr.mxu0 0.0
    %270 = vmatpush1.msra.mxu0 %v240
    %271 = vmatprep.subr.mxu0 0.0
    %272 = vmatpush1.msra.mxu0 %v241
    %273 = vmatprep.subr.mxu0 0.0
    %274 = vmatpush1.msra.mxu0 %v242
    %275 = vmatprep.subr.mxu0 0.0
    %276 = vmatpush1.msra.mxu0 %v243
    %277 = vmatprep.subr.mxu0 0.0
    %278 = vmatpush1.msra.mxu0 %v244
    %279 = vmatprep.subr.mxu0 0.0
    %280 = vmatpush1.msra.mxu0 %v245
    %281 = vmatprep.subr.mxu0 0.0
    %282 = vmatpush1.msra.mxu0 %v246
    %283 = vmatprep.subr.mxu0 0.0
    %284 = vmatpush1.msra.mxu0 %v247
    %285 = vmatprep.subr.mxu0 0.0
    %286 = vmatpush1.msra.mxu0 0.0
    %287 = vmatprep.subr.mxu0 0.0
    %288 = vmatpush1.msra.mxu0 0.0
    %289 = vmatprep.subr.mxu0 0.0
    %290 = vmatpush1.msra.mxu0 0.0
    %291 = vmatprep.subr.mxu0 0.0
    %292 = vmatpush1.msra.mxu0 0.0
    %293 = vmatprep.subr.mxu0 0.0
    %294 = vmatpush1.msra.mxu0 0.0
    %295 = vmatprep.subr.mxu0 0.0
    %296 = vmatpush1.msra.mxu0 0.0
    %297 = vmatprep.subr.mxu0 0.0
    %298 = vmatpush1.msra.mxu0 0.0
    %299 = vmatprep.subr.mxu0 0.0
    %300 = vmatpush1.msra.mxu0 0.0
    %301 = vmatprep.subr.mxu0 0.0
    %302 = vmatpush1.msra.mxu0 0.0
    %303 = vmatprep.subr.mxu0 0.0
    %304 = vmatpush1.msra.mxu0 0.0
    %305 = vmatprep.subr.mxu0 0.0
    %306 = vmatpush1.msra.mxu0 0.0
    %307 = vmatprep.subr.mxu0 0.0
    %308 = vmatpush1.msra.mxu0 0.0
    %309 = vmatprep.subr.mxu0 0.0
    %310 = vmatpush1.msra.mxu0 0.0
    %311 = vmatprep.subr.mxu0 0.0
    %312 = vmatpush1.msra.mxu0 0.0
    %313 = vmatprep.subr.mxu0 0.0
    %314 = vmatpush1.msra.mxu0 0.0
    %315 = vmatprep.subr.mxu0 0.0
    %316 = vmatpush1.msra.mxu0 0.0
    %317 = vmatprep.mubr.f32.mxu0 0.0
    %318 = vmatmul.mubr.f32.gmra.mrb[0].mxu0 %v230
    %v319 = vpop.f32.mrb[0].mxu0
    %v320 = vadd.f32 %v252, %v319
    %v321 = vpop.f32.mrb[0].mxu0
    %322 = vdwg.mxu0
    %vm323 = vcmp.ge.f32.partialorder %v320, 0.0
    %v324 = vsel %vm323, 1.4142135, 0.28284273
    %v325 = vmul.f32 %v320, %v324
    %s326 = scalar_lea.vmem [#allocation5], 384
    %v327 = vld [vmem:[%s326] sm:$0xff]
    %v328 = vld [vmem:[%s326 + $0x8] sm:$0xff]
    %v329 = vld [vmem:[%s326 + $0x10] sm:$0xff]
    %v330 = vld [vmem:[%s326 + $0x18] sm:$0xff]
    %v331 = vld [vmem:[%s326 + $0x20] sm:$0xff]
    %v332 = vld [vmem:[%s326 + $0x28] sm:$0xff]
    %v333 = vld [vmem:[%s326 + $0x30] sm:$0xff]
    %v334 = vld [vmem:[%s326 + $0x38] sm:$0xff]
    %v335 = vld [vmem:[%s326 + $0x40] sm:$0xff]
    %v336 = vld [vmem:[%s326 + $0x48] sm:$0xff]
    %v337 = vld [vmem:[%s326 + $0x50] sm:$0xff]
    %v338 = vld [vmem:[%s326 + $0x58] sm:$0xff]
    %v339 = vld [vmem:[%s326 + $0x60] sm:$0xff]
    %v340 = vld [vmem:[%s326 + $0x68] sm:$0xff]
    %v341 = vld [vmem:[%s326 + $0x70] sm:$0xff]
    %v342 = vld [vmem:[%s326 + $0x78] sm:$0xff]
    %v343 = vld [vmem:[%s2 + $0x3] sm:$0x1]
    %v344 = vlaneseq
    %v345 = vshrl.u32 %v344, 7
    %v346 = vsub.s32 0, %v345
    %v347 = vrot.slane %v343, %v346
    %348 = vmatprep.subr.mxu0 0.0
    %349 = vmatpush1.msra.mxu0 %v327
    %350 = vmatprep.subr.mxu0 0.0
    %351 = vmatpush1.msra.mxu0 %v328
    %352 = vmatprep.subr.mxu0 0.0
    %353 = vmatpush1.msra.mxu0 %v329
    %354 = vmatprep.subr.mxu0 0.0
    %355 = vmatpush1.msra.mxu0 %v330
    %356 = vmatprep.subr.mxu0 0.0
    %357 = vmatpush1.msra.mxu0 %v331
    %358 = vmatprep.subr.mxu0 0.0
    %359 = vmatpush1.msra.mxu0 %v332
    %360 = vmatprep.subr.mxu0 0.0
    %361 = vmatpush1.msra.mxu0 %v333
    %362 = vmatprep.subr.mxu0 0.0
    %363 = vmatpush1.msra.mxu0 %v334
    %364 = vmatprep.subr.mxu0 0.0
    %365 = vmatpush1.msra.mxu0 %v335
    %366 = vmatprep.subr.mxu0 0.0
    %367 = vmatpush1.msra.mxu0 %v336
    %368 = vmatprep.subr.mxu0 0.0
    %369 = vmatpush1.msra.mxu0 %v337
    %370 = vmatprep.subr.mxu0 0.0
    %371 = vmatpush1.msra.mxu0 %v338
    %372 = vmatprep.subr.mxu0 0.0
    %373 = vmatpush1.msra.mxu0 %v339
    %374 = vmatprep.subr.mxu0 0.0
    %375 = vmatpush1.msra.mxu0 %v340
    %376 = vmatprep.subr.mxu0 0.0
    %377 = vmatpush1.msra.mxu0 %v341
    %378 = vmatprep.subr.mxu0 0.0
    %379 = vmatpush1.msra.mxu0 %v342
    %380 = vmatprep.subr.mxu0 0.0
    %381 = vmatpush1.msra.mxu0 0.0
    %382 = vmatprep.subr.mxu0 0.0
    %383 = vmatpush1.msra.mxu0 0.0
    %384 = vmatprep.subr.mxu0 0.0
    %385 = vmatpush1.msra.mxu0 0.0
    %386 = vmatprep.subr.mxu0 0.0
    %387 = vmatpush1.msra.mxu0 0.0
    %388 = vmatprep.subr.mxu0 0.0
    %389 = vmatpush1.msra.mxu0 0.0
    %390 = vmatprep.subr.mxu0 0.0
    %391 = vmatpush1.msra.mxu0 0.0
    %392 = vmatprep.subr.mxu0 0.0
    %393 = vmatpush1.msra.mxu0 0.0
    %394 = vmatprep.subr.mxu0 0.0
    %395 = vmatpush1.msra.mxu0 0.0
    %396 = vmatprep.subr.mxu0 0.0
    %397 = vmatpush1.msra.mxu0 0.0
    %398 = vmatprep.subr.mxu0 0.0
    %399 = vmatpush1.msra.mxu0 0.0
    %400 = vmatprep.subr.mxu0 0.0
    %401 = vmatpush1.msra.mxu0 0.0
    %402 = vmatprep.subr.mxu0 0.0
    %403 = vmatpush1.msra.mxu0 0.0
    %404 = vmatprep.subr.mxu0 0.0
    %405 = vmatpush1.msra.mxu0 0.0
    %406 = vmatprep.subr.mxu0 0.0
    %407 = vmatpush1.msra.mxu0 0.0
    %408 = vmatprep.subr.mxu0 0.0
    %409 = vmatpush1.msra.mxu0 0.0
    %410 = vmatprep.subr.mxu0 0.0
    %411 = vmatpush1.msra.mxu0 0.0
    %412 = vmatprep.mubr.f32.mxu0 0.0
    %413 = vmatmul.mubr.f32.gmra.mrb[0].mxu0 %v325
    %v414 = vpop.f32.mrb[0].mxu0
    %v415 = vadd.f32 %v347, %v414
    %v416 = vpop.f32.mrb[0].mxu0
    %417 = vdwg.mxu0
    %418 = vst [vmem:[#allocation7] sm:$0xff] %v415
    // Predicated region
    $region22: #{tpu_custom_call.1} parent=1 // pred_check
      _
    $region23: #{tpu_custom_call.1} parent=1 // pred_check_branch
      %420 = sbr.rel (0) target = $region25
    $region24: #{tpu_custom_call.1} parent=1 // pred_region
      %s422 = ssub.s32 128, 128
      %423 = vsyncadd [#allocation4], %s422
      %s425 = sshll.u32 [#allocation7], 4
      %s426 = int_to_ptr.vmem [resolvable:$true] %s425
      %428 = dma.vmem_to_hbm [thread:$0]  %s426, 128, %s3, [#allocation4]
    $region25: #{tpu_custom_call.1} parent=1 // pred_fallthru
      _
    // Predicated region
    $region26: #{tpu_custom_call.1} parent=1 // pred_check
      _
    $region27: #{tpu_custom_call.1} parent=1 // pred_check_branch
      %430 = sbr.rel (0) target = $region29
    $region28: #{tpu_custom_call.1} parent=1 // pred_region
      %431 = dma.done [#allocation4], 128
    $region29: #{tpu_custom_call.1} parent=1 // pred_fallthru
      _
    %432 = vsyncpa [#allocation3], 1
    %433 = vsyncpa [#allocation6], 1
    %434 = vsyncpa [#allocation4], 1

</llo_original>
